<compile_context>
chip_gen: v6e
topology: v6e:2x2x1
jax: 0.10.0
libtpu: 0.0.40
codegen_flags: <defaults>
</compile_context>

<pallas_src>
import functools
import math

import jax
import jax.numpy as jnp
from jax import lax
from jax.experimental import pallas as pl
from jax.experimental.pallas import tpu as pltpu

LANE = 128          # TPU lane width; every feature axis is padded to this.
NEG_BIG = -1e30     # baked softmax mask value.


def ac_kernel(s_ref, w1_ref, wh_ref, out_ref, *, num_actions):
    # Hidden layer: b1 is folded into w1 via the constant-1 state lane, so this
    # is a single bf16 MXU pass with f32 accumulation, then ReLU.
    x = jnp.dot(s_ref[...], w1_ref[...], preferred_element_type=jnp.float32)
    x = jnp.maximum(x, 0.0)

    # Fused policy+value head: head biases ride in via the constant hidden
    # column, and the softmax mask for lanes > num_actions is pre-baked into
    # the head weights, so no bias add / mask build is needed here.
    logits = jnp.dot(x.astype(jnp.bfloat16), wh_ref[...],
                     preferred_element_type=jnp.float32)

    lane = lax.broadcasted_iota(jnp.int32, logits.shape, 1)
    is_value = lane == num_actions            # single lane predicate

    # Softmax over the action lanes only: lanes > A already hold -1e30, so only
    # the value lane still needs masking before max/exp.
    pol_logits = jnp.where(is_value, NEG_BIG, logits)
    m = jnp.max(pol_logits, axis=-1, keepdims=True)
    e = jnp.exp(pol_logits - m)               # exactly 0 outside action lanes
    denom = jnp.sum(e, axis=-1, keepdims=True)
    # Exact reciprocal so each policy row sums to 1 (sampling / log-prob safe).
    policy = e * pl.reciprocal(denom, approx=False)

    # One unmasked (B, 128) f32 store: policy in lanes 0..A-1, value in lane A,
    # zeros elsewhere.
    out_ref[...] = jnp.where(is_value, logits, policy)


def prepare_params(w1, b1, wp, bp, wv, bv):
    """One-time host-side packing: pad to the 128-lane grid, fold both biases
    into the weights, fuse the policy+value heads, bake the softmax mask, and
    cast the weight slabs to bf16."""
    in_dim, hidden = w1.shape
    a = wp.shape[1]
    assert in_dim < LANE and hidden < LANE and a + 1 <= LANE

    w1p = jnp.zeros((LANE, LANE), jnp.float32)
    w1p = w1p.at[:in_dim, :hidden].set(w1)
    w1p = w1p.at[in_dim, :hidden].set(b1.reshape(-1))   # b1 via constant-1 lane
    w1p = w1p.at[in_dim, hidden].set(1.0)               # emits 1 after ReLU

    whp = jnp.zeros((LANE, LANE), jnp.float32)
    whp = whp.at[:hidden, :a].set(wp)                   # policy head
    whp = whp.at[:hidden, a].set(wv.reshape(-1))        # value head -> lane a
    whp = whp.at[hidden, :a].set(bp.reshape(-1))        # head biases via the
    whp = whp.at[hidden, a].set(bv.reshape(-1)[0])      #   constant hidden col
    whp = whp.at[hidden, a + 1:].set(NEG_BIG)           # baked softmax mask

    return w1p.astype(jnp.bfloat16), whp.astype(jnp.bfloat16)


@functools.partial(jax.jit, static_argnames=("num_actions",))
def ac_forward(state, w1p, whp, *, num_actions):
    """Returns the lane-dense (B, 128) f32 slab:
       policy = out[:, :num_actions], value = out[:, num_actions:num_actions+1]
    Slicing is left to the consumer so XLA fuses it where it is used."""
    B, in_dim = state.shape
    # Augment + pad the state: [state | 1 | 0 ... 0] -> (B, 128), bf16.
    s_aug = jnp.concatenate(
        [state,
         jnp.ones((B, 1), state.dtype),
         jnp.zeros((B, LANE - in_dim - 1), state.dtype)],
        axis=1).astype(jnp.bfloat16)

    flops = 2 * (2 * B * LANE * LANE)              # two (B,128)x(128,128) dots
    bytes_accessed = (B * LANE * 2                 # bf16 state slab
                      + 2 * LANE * LANE * 2        # bf16 weight slabs
                      + B * LANE * 4)              # f32 output slab

    vmem = pl.BlockSpec(memory_space=pltpu.MemorySpace.VMEM)
    out = pl.pallas_call(
        functools.partial(ac_kernel, num_actions=num_actions),
        out_shape=jax.ShapeDtypeStruct((B, LANE), jnp.float32),
        in_specs=[vmem, vmem, vmem],
        out_specs=vmem,
        compiler_params=pltpu.CompilerParams(
            # Allow XLA to fuse the pad/cast producing the state operand into
            # the kernel input; the weight slabs are plain parameters.
            allow_input_fusion=[True, False, False]),
        cost_estimate=pl.CostEstimate(
            flops=flops, transcendentals=B * LANE,
            bytes_accessed=bytes_accessed),
    )(s_aug, w1p, whp)
    # TODO(synk): when B grows (vectorized envs / scanned rollouts), add
    # grid=(pl.cdiv(B, TB),) with a row-tiled BlockSpec and
    # dimension_semantics=("parallel",) to exploit v7x's 2 TensorCores.
    return out


def init_linear(key, fan_in, fan_out):
    """PyTorch nn.Linear-style uniform init; weight stored as (in, out)."""
    bound = 1.0 / math.sqrt(fan_in)
    kw, kb = jax.random.split(key)
    w = jax.random.uniform(kw, (fan_in, fan_out), jnp.float32, -bound, bound)
    b = jax.random.uniform(kb, (1, fan_out), jnp.float32, -bound, bound)
    return w, b


if __name__ == "__main__":
    # env_infos = [6, env.actionSpaceSize()]; action-space size taken as 4 for
    # the 2-joint robot (env.World is not available here).
    IN_DIM, ACTIONS, HIDDEN, BATCH = 6, 4, 64, 8

    key = jax.random.PRNGKey(0)
    k_state, k_l1, k_pol, k_val = jax.random.split(key, 4)

    state = jax.random.normal(k_state, (BATCH, IN_DIM), jnp.float32)
    w1, b1 = init_linear(k_l1, IN_DIM, HIDDEN)
    wp, bp = init_linear(k_pol, HIDDEN, ACTIONS)
    wv, bv = init_linear(k_val, HIDDEN, 1)

    w1p, whp = prepare_params(w1, b1, wp, bp, wv, bv)   # one-time packing

    out = jax.block_until_ready(
        ac_forward(state, w1p, whp, num_actions=ACTIONS))
    policy = out[:, :ACTIONS]                   # slice the slab at the consumer
    value = out[:, ACTIONS:ACTIONS + 1]

    # Reference 1: exact PyTorch-module semantics in f32.
    x32 = jnp.maximum(state @ w1 + b1, 0.0)
    pol32 = jax.nn.softmax(x32 @ wp + bp, axis=-1)
    val32 = x32 @ wv + bv

    # Reference 2: mirrors the kernel's bf16 parameter/activation storage.
    q = lambda v: v.astype(jnp.bfloat16).astype(jnp.float32)
    xq = q(jnp.maximum(q(state) @ q(w1) + q(b1), 0.0))
    polq = jax.nn.softmax(xq @ q(wp) + q(bp), axis=-1)
    valq = xq @ q(wv) + q(bv)

    assert policy.shape == (BATCH, ACTIONS) and value.shape == (BATCH, 1)
    # exact reciprocal -> each policy row sums to 1
    assert jnp.allclose(jnp.sum(policy, axis=-1), 1.0, atol=1e-5)
    # tight check against the bf16-faithful reference (kernel math is correct)
    assert jnp.allclose(policy, polq, atol=5e-4, rtol=5e-4)
    assert jnp.allclose(value, valq, atol=5e-4, rtol=5e-4)
    # loose check against the original f32 module (bf16 storage is benign)
    assert jnp.allclose(policy, pol32, atol=1e-2, rtol=1e-2)
    assert jnp.allclose(value, val32, atol=2e-2, rtol=2e-2)

    print("KERNEL_OK")
</pallas_src>

<mosaic_0001>
module attributes {stable_mosaic.version = 11 : i64} {
  func.func @ac_kernel(%arg0: memref<8x128xbf16, #tpu.memory_space<vmem>>, %arg1: memref<128x128xbf16, #tpu.memory_space<vmem>>, %arg2: memref<128x128xbf16, #tpu.memory_space<vmem>>, %arg3: memref<8x128xf32, #tpu.memory_space<vmem>>) attributes {dimension_semantics = [], scalar_prefetch = 0 : i64, scratch_operands = 0 : i64, tpu.core_type = #tpu.core_type<tc>} {
    %c0 = arith.constant 0 : index
    %c0_0 = arith.constant 0 : index
    %0 = vector.load %arg0[%c0, %c0_0] : memref<8x128xbf16, #tpu.memory_space<vmem>>, vector<8x128xbf16>
    %c0_1 = arith.constant 0 : index
    %c0_2 = arith.constant 0 : index
    %1 = vector.load %arg1[%c0_1, %c0_2] : memref<128x128xbf16, #tpu.memory_space<vmem>>, vector<128x128xbf16>
    %cst = arith.constant dense<0.000000e+00> : vector<8x128xf32>
    %2 = tpu.matmul %0, %1, %cst {dimension_numbers = #tpu.dot_dimension_numbers<[1], [0], [0], [1], [0, 0, 1, 1], [], []>} : vector<8x128xbf16>, vector<128x128xbf16>, vector<8x128xf32> -> vector<8x128xf32>
    %cst_3 = arith.constant 0.000000e+00 : f32
    %3 = vector.broadcast %cst_3 : f32 to vector<8x128xf32>
    %4 = arith.maximumf %2, %3 : vector<8x128xf32>
    %5 = arith.truncf %4 : vector<8x128xf32> to vector<8x128xbf16>
    %c0_4 = arith.constant 0 : index
    %c0_5 = arith.constant 0 : index
    %6 = vector.load %arg2[%c0_4, %c0_5] : memref<128x128xbf16, #tpu.memory_space<vmem>>, vector<128x128xbf16>
    %cst_6 = arith.constant dense<0.000000e+00> : vector<8x128xf32>
    %7 = tpu.matmul %5, %6, %cst_6 {dimension_numbers = #tpu.dot_dimension_numbers<[1], [0], [0], [1], [0, 0, 1, 1], [], []>} : vector<8x128xbf16>, vector<128x128xbf16>, vector<8x128xf32> -> vector<8x128xf32>
    %8 = tpu.iota {dimensions = array<i32: 1>} : vector<8x128xi32>
    %c4_i32 = arith.constant 4 : i32
    %9 = vector.broadcast %c4_i32 : i32 to vector<8x128xi32>
    %10 = arith.cmpi eq, %8, %9 : vector<8x128xi32>
    %cst_7 = arith.constant -1.000000e+30 : f32
    %11 = vector.broadcast %cst_7 : f32 to vector<8x128xf32>
    %12 = arith.select %10, %11, %7 : vector<8x128xi1>, vector<8x128xf32>
    %cst_8 = arith.constant dense<0xFF800000> : vector<8xf32>
    %13 = vector.multi_reduction <maximumf>, %12, %cst_8 [1] : vector<8x128xf32> to vector<8xf32>
    %14 = vector.shape_cast %13 : vector<8xf32> to vector<8x1xf32>
    %15 = vector.broadcast %14 : vector<8x1xf32> to vector<8x128xf32>
    %16 = arith.subf %12, %15 : vector<8x128xf32>
    %17 = math.exp %16 : vector<8x128xf32>
    %cst_9 = arith.constant dense<0.000000e+00> : vector<8xf32>
    %18 = vector.multi_reduction <add>, %17, %cst_9 [1] : vector<8x128xf32> to vector<8xf32>
    %19 = vector.shape_cast %18 : vector<8xf32> to vector<8x1xf32>
    %20 = tpu.reciprocal %19 : vector<8x1xf32> -> vector<8x1xf32>
    %21 = vector.broadcast %20 : vector<8x1xf32> to vector<8x128xf32>
    %22 = arith.mulf %17, %21 : vector<8x128xf32>
    %23 = arith.select %10, %7, %22 : vector<8x128xi1>, vector<8x128xf32>
    %c0_10 = arith.constant 0 : index
    %c0_11 = arith.constant 0 : index
    %24 = vector.load %arg3[%c0_10, %c0_11] : memref<8x128xf32, #tpu.memory_space<vmem>>, vector<8x128xf32>
    tpu.vector_store %arg3[%c0_10, %c0_11], %23 {strides = array<i32>} : memref<8x128xf32, #tpu.memory_space<vmem>>, vector<8x128xf32>,
    return
  }
}

</mosaic_0001>

<llo_original>
// kernel: ac_forward.2
$region0: #{ac_forward.2}
  #allocation0 [shape = 'u32[]', space=smem, size = 0x4, offset = 0x4, fixed_abs, tag = 'smem constant byte address 0x4 - core index']
  #allocation1 [shape = 'u32[144,128]{1,0:T(1,128)}', space=vmem, size = 0x12000, scoped, tag = 'internal scratch']
  #allocation2 [shape = 'u32[2048]{0}', space=vmem, size = 0x2000, scoped, tag = 'scoped memory for ac_forward.2']
  #allocation3 [shape = 'u32[2048]{0}', space=vmem, size = 0x2000, scoped, tag = 'scoped memory for ac_forward.2']
  #allocation4 [shape = 'u32[2048]{0}', space=vmem, size = 0x2000, scoped, tag = 'scoped memory for ac_forward.2']
  #allocation5 [shape = 'u32[2048]{0}', space=vmem, size = 0x2000, scoped, tag = 'scoped memory for ac_forward.2']
  #allocation6 [shape = 'u32[2048]{0}', space=vmem, size = 0x2000, scoped, tag = 'scoped memory for ac_forward.2']
  %s0 = inlined_call_operand.hbm [shape: bf16[128,128], index: 0, kind: input, shape index: {}]
  %s1 = inlined_call_operand.hbm [shape: bf16[128,128], index: 1, kind: input, shape index: {}]
  %s2 = inlined_call_operand.vmem [shape: bf16[8,6], index: 2, kind: input, shape index: {}]
  %s3 = inlined_call_operand.<no memory space> [shape: bf16[], index: 3, kind: input, shape index: {}]
  %s4 = inlined_call_operand.vmem [shape: bf16[128], index: 4, kind: input, shape index: {}]
  %s5 = inlined_call_operand.vmem [shape: bf16[128], index: 5, kind: input, shape index: {}]
  %s6 = inlined_call_operand.hbm [shape: f32[8,128], index: 6, kind: output, shape index: {}]
  %s7 = sld [smem:[#allocation0]]
  $region38: #{ac_forward.2} parent=0
    _
  %s9 = ssub.s32 1, %s7
  %s10 = scalar_select 0, %s9, %s7
  %v11 = vstv %s3
  %v12 = vunpack.i.l.bf16 %v11
  %v14 = vunpack.i.h.bf16 %v11
  $region1: #{ac_forward.2} parent=0
    #allocation7 [shape = 'u8[32768]{0}', space=vmem, size = 0x8000, scoped, tag = 'input window, operand 1, single buffered']
    #allocation8 [shape = 's32[1]{0}', space=sflag, size = 0x4, scoped, tag = 'scoped memory for ac_forward.2']
    #allocation9 [shape = 's32[1]{0}', space=sflag, size = 0x4, scoped, tag = 'scoped memory for ac_forward.2']
    #allocation10 [shape = 'u8[32768]{0}', space=vmem, size = 0x8000, scoped, tag = 'input window, operand 2, single buffered']
    #allocation11 [shape = 's32[1]{0}', space=sflag, size = 0x4, scoped, tag = 'scoped memory for ac_forward.2']
    #allocation12 [shape = 'u8[4096]{0}', space=vmem, size = 0x1000, scoped, tag = 'output window, operand 0, single buffered']
    #allocation13 [shape = 'u8[2048]{0}', space=vmem, size = 0x800, dematerialized = true, scoped, tag = 'FusionAdapter Buffer %fusion.1 = bf16[8,128]{1,0:T(8,128)(2,1)} fusion(%param_2.7, %param_3.6, %param_4.3, %param_5.2), kind=kLoop, calls=%fused_computation.1.clone, metadata={op_name="jit(ac_forward)/concatenate" stack_frame_id=8}']
    %16 = vsyncpa [#allocation8], 0
    %17 = vsyncpa [#allocation11], 0
    %18 = vsyncpa [#allocation9], 0
    // Predicated region
    $region2: #{ac_forward.2} parent=1 // pred_check
      _
    $region3: #{ac_forward.2} parent=1 // pred_check_branch
      %20 = sbr.rel (0) target = $region5
    $region4: #{ac_forward.2} parent=1 // pred_region
      _
    $region5: #{ac_forward.2} parent=1 // pred_fallthru
      _
    // Predicated region
    $region6: #{ac_forward.2} parent=1 // pred_check
      _
    $region7: #{ac_forward.2} parent=1 // pred_check_branch
      %22 = sbr.rel (0) target = $region9
    $region8: #{ac_forward.2} parent=1 // pred_region
      _
    $region9: #{ac_forward.2} parent=1 // pred_fallthru
      _
    // Predicated region
    $region10: #{ac_forward.2} parent=1 // pred_check
      _
    $region11: #{ac_forward.2} parent=1 // pred_check_branch
      %24 = sbr.rel (0) target = $region13
    $region12: #{ac_forward.2} parent=1 // pred_region
      _
    $region13: #{ac_forward.2} parent=1 // pred_fallthru
      _
    // Predicated region
    $region14: #{ac_forward.2} parent=1 // pred_check
      _
    $region15: #{ac_forward.2} parent=1 // pred_check_branch
      %26 = sbr.rel (0) target = $region17
    $region16: #{ac_forward.2} parent=1 // pred_region
      %s28 = ssub.s32 1024, 1024
      %29 = vsyncadd [#allocation8], %s28
      %s30 = sshll.u32 [#allocation7], 4
      %s31 = int_to_ptr.vmem [resolvable:$true] %s30
      %36 = dma.hbm_to_vmem [thread:$0]  %s0, 1024, %s31, [#allocation8], 64, 64, 4
    $region17: #{ac_forward.2} parent=1 // pred_fallthru
      _
    // Predicated region
    $region18: #{ac_forward.2} parent=1 // pred_check
      _
    $region19: #{ac_forward.2} parent=1 // pred_check_branch
      %38 = sbr.rel (0) target = $region21
    $region20: #{ac_forward.2} parent=1 // pred_region
      %s40 = ssub.s32 1024, 1024
      %41 = vsyncadd [#allocation11], %s40
      %s42 = sshll.u32 [#allocation10], 4
      %s43 = int_to_ptr.vmem [resolvable:$true] %s42
      %48 = dma.hbm_to_vmem [thread:$0]  %s1, 1024, %s43, [#allocation11], 64, 64, 4
    $region21: #{ac_forward.2} parent=1 // pred_fallthru
      _
    // Predicated region
    $region22: #{ac_forward.2} parent=1 // pred_check
      _
    $region23: #{ac_forward.2} parent=1 // pred_check_branch
      %50 = sbr.rel (0) target = $region25
    $region24: #{ac_forward.2} parent=1 // pred_region
      %51 = dma.done [#allocation8], 1024
    $region25: #{ac_forward.2} parent=1 // pred_fallthru
      _
    // Predicated region
    $region26: #{ac_forward.2} parent=1 // pred_check
      _
    $region27: #{ac_forward.2} parent=1 // pred_check_branch
      %53 = sbr.rel (0) target = $region29
    $region28: #{ac_forward.2} parent=1 // pred_region
      %54 = dma.done [#allocation11], 1024
    $region29: #{ac_forward.2} parent=1 // pred_fallthru
      _
    %s56 = sor.u32 255, 127
    %s57 = sand.u32 %s56, 85
    %s58 = sshrl.u32 %s57, 1
    %s59 = sor.u32 %s57, %s58
    %s60 = sand.u32 51, %s59
    %s61 = sshrl.u32 %s60, 2
    %s62 = sor.u32 %s60, %s61
    %s63 = sand.u32 15, %s62
    %v64 = vld [vmem:[%s2] sm:%s63]
    %v65 = vunpack.c.l.bf16 %v64
    %v66 = vunpack.c.h.bf16 %v64
    %v67 = vlaneseq
    %v68 = vand.u32 %v67, 127
    %vm70 = vcmp.lt.s32.totalorder %v68, 6
    %v71 = vsel %vm70, %v65, %v12
    %v72 = vld [vmem:[%s4] ss:$0 sm:$0xff]
    %v73 = vunpack.i.l.bf16 %v72
    %v75 = vunpack.i.h.bf16 %v72
    %v77 = vld [vmem:[%s5] ss:$0 sm:$0xff]
    %v78 = vunpack.i.l.bf16 %v77
    %v80 = vunpack.i.h.bf16 %v77
    %82 = xla_tuple %v71, %v78
    %83 = xla_tuple %82
    %v84 = vmax.f32 %v71, %v78
    %85 = xla_tuple %v84
    %86 = xla_tuple %v84, %v73
    %87 = xla_tuple %86
    %v88 = vmax.f32 %v84, %v73
    %89 = xla_tuple %v88
    %v90 = vpack.c.bf16 0.0, %v88
    %s92 = ssub.s32 16, 1
    %93 = vst [vmem:[#allocation13] sm:%s92] %v90
    %v95 = vld [vmem:[#allocation13] sm:$0xf]
    %v96 = vld [vmem:[#allocation7] sm:$0xf]
    %v97 = vld [vmem:[#allocation7 + $0x4] sm:$0xf]
    %v98 = vld [vmem:[#allocation7 + $0x8] sm:$0xf]
    %v99 = vld [vmem:[#allocation7 + $0xc] sm:$0xf]
    %v100 = vld [vmem:[#allocation7 + $0x10] sm:$0xf]
    %v101 = vld [vmem:[#allocation7 + $0x14] sm:$0xf]
    %v102 = vld [vmem:[#allocation7 + $0x18] sm:$0xf]
    %v103 = vld [vmem:[#allocation7 + $0x1c] sm:$0xf]
    %v104 = vld [vmem:[#allocation7 + $0x20] sm:$0xf]
    %v105 = vld [vmem:[#allocation7 + $0x24] sm:$0xf]
    %v106 = vld [vmem:[#allocation7 + $0x28] sm:$0xf]
    %v107 = vld [vmem:[#allocation7 + $0x2c] sm:$0xf]
    %v108 = vld [vmem:[#allocation7 + $0x30] sm:$0xf]
    %v109 = vld [vmem:[#allocation7 + $0x34] sm:$0xf]
    %v110 = vld [vmem:[#allocation7 + $0x38] sm:$0xf]
    %v111 = vld [vmem:[#allocation7 + $0x3c] sm:$0xf]
    %v128 = vunpack.c.l.b16 %v96
    %v129 = vunpack.c.l.b16 %v97
    %v130 = vunpack.c.l.b16 %v98
    %v131 = vunpack.c.l.b16 %v99
    %v132 = vunpack.c.l.b16 %v100
    %v133 = vunpack.c.l.b16 %v101
    %v134 = vunpack.c.l.b16 %v102
    %v135 = vunpack.c.l.b16 %v103
    %v136 = vunpack.c.l.b16 %v104
    %v137 = vunpack.c.l.b16 %v105
    %v138 = vunpack.c.l.b16 %v106
    %v139 = vunpack.c.l.b16 %v107
    %v140 = vunpack.c.l.b16 %v108
    %v141 = vunpack.c.l.b16 %v109
    %v142 = vunpack.c.l.b16 %v110
    %v143 = vunpack.c.l.b16 %v111
    %v144 = vpack.c.b16 %v129, %v128
    %v145 = vpack.c.b16 %v131, %v130
    %v146 = vpack.c.b16 %v133, %v132
    %v147 = vpack.c.b16 %v135, %v134
    %v148 = vpack.c.b16 %v137, %v136
    %v149 = vpack.c.b16 %v139, %v138
    %v150 = vpack.c.b16 %v141, %v140
    %v151 = vpack.c.b16 %v143, %v142
    %160 = vmatprep.subr.bf16.mxu0 0
    %161 = vmatpush1.bf16.msra.mxu0 %v151
    %162 = vmatprep.subr.bf16.mxu0 0
    %163 = vmatpush1.bf16.msra.mxu0 %v150
    %164 = vmatprep.subr.bf16.mxu0 0
    %165 = vmatpush1.bf16.msra.mxu0 %v149
    %166 = vmatprep.subr.bf16.mxu0 0
    %167 = vmatpush1.bf16.msra.mxu0 %v148
    %168 = vmatprep.subr.bf16.mxu0 0
    %169 = vmatpush1.bf16.msra.mxu0 %v147
    %170 = vmatprep.subr.bf16.mxu0 0
    %171 = vmatpush1.bf16.msra.mxu0 %v146
    %172 = vmatprep.subr.bf16.mxu0 0
    %173 = vmatpush1.bf16.msra.mxu0 %v145
    %174 = vmatprep.subr.bf16.mxu0 0
    %175 = vmatpush1.bf16.msra.mxu0 %v144
    %176 = vmatprep.subr.bf16.mxu0 0
    %177 = vmatpush2.bf16.msra.mxu0 0
    %178 = vmatprep.subr.bf16.mxu0 0
    %179 = vmatpush2.bf16.msra.mxu0 0
    %180 = vmatprep.subr.bf16.mxu0 0
    %181 = vmatpush2.bf16.msra.mxu0 0
    %182 = vmatprep.subr.bf16.mxu0 0
    %183 = vmatpush2.bf16.msra.mxu0 0
    %184 = vmatprep.subr.bf16.mxu0 0
    %185 = vmatpush2.bf16.msra.mxu0 0
    %186 = vmatprep.subr.bf16.mxu0 0
    %187 = vmatpush2.bf16.msra.mxu0 0
    %188 = vmatprep.subr.bf16.mxu0 0
    %189 = vmatpush2.bf16.msra.mxu0 0
    %190 = vmatprep.subr.bf16.mxu0 0
    %191 = vmatpush2.bf16.msra.mxu0 0
    %192 = vmatprep.mubr.bf16.mxu0 0
    %193 = vmatmul.mubr.bf16.gmra.mxu0 %v95
    %v194 = vpop.f32.mrf.mxu0
    %v195 = vadd.f32 0.0, %v194
    %v196 = vpop.f32.mrf.mxu0
    %v197 = vpop.f32.mrf.mxu0
    %v198 = vpop.f32.mrf.mxu0
    %199 = vdwg.mxu0
    %v200 = vmax.f32 %v195, 0.0
    %v201 = vpack.c.bf16 %v200, %v200
    %v202 = vld [vmem:[#allocation10] sm:$0xf]
    %v203 = vld [vmem:[#allocation10 + $0x4] sm:$0xf]
    %v204 = vld [vmem:[#allocation10 + $0x8] sm:$0xf]
    %v205 = vld [vmem:[#allocation10 + $0xc] sm:$0xf]
    %v206 = vld [vmem:[#allocation10 + $0x10] sm:$0xf]
    %v207 = vld [vmem:[#allocation10 + $0x14] sm:$0xf]
    %v208 = vld [vmem:[#allocation10 + $0x18] sm:$0xf]
    %v209 = vld [vmem:[#allocation10 + $0x1c] sm:$0xf]
    %v210 = vld [vmem:[#allocation10 + $0x20] sm:$0xf]
    %v211 = vld [vmem:[#allocation10 + $0x24] sm:$0xf]
    %v212 = vld [vmem:[#allocation10 + $0x28] sm:$0xf]
    %v213 = vld [vmem:[#allocation10 + $0x2c] sm:$0xf]
    %v214 = vld [vmem:[#allocation10 + $0x30] sm:$0xf]
    %v215 = vld [vmem:[#allocation10 + $0x34] sm:$0xf]
    %v216 = vld [vmem:[#allocation10 + $0x38] sm:$0xf]
    %v217 = vld [vmem:[#allocation10 + $0x3c] sm:$0xf]
    %v234 = vunpack.c.l.b16 %v202
    %v235 = vunpack.c.l.b16 %v203
    %v236 = vunpack.c.l.b16 %v204
    %v237 = vunpack.c.l.b16 %v205
    %v238 = vunpack.c.l.b16 %v206
    %v239 = vunpack.c.l.b16 %v207
    %v240 = vunpack.c.l.b16 %v208
    %v241 = vunpack.c.l.b16 %v209
    %v242 = vunpack.c.l.b16 %v210
    %v243 = vunpack.c.l.b16 %v211
    %v244 = vunpack.c.l.b16 %v212
    %v245 = vunpack.c.l.b16 %v213
    %v246 = vunpack.c.l.b16 %v214
    %v247 = vunpack.c.l.b16 %v215
    %v248 = vunpack.c.l.b16 %v216
    %v249 = vunpack.c.l.b16 %v217
    %v250 = vpack.c.b16 %v235, %v234
    %v251 = vpack.c.b16 %v237, %v236
    %v252 = vpack.c.b16 %v239, %v238
    %v253 = vpack.c.b16 %v241, %v240
    %v254 = vpack.c.b16 %v243, %v242
    %v255 = vpack.c.b16 %v245, %v244
    %v256 = vpack.c.b16 %v247, %v246
    %v257 = vpack.c.b16 %v249, %v248
    %266 = vmatprep.subr.bf16.mxu0 0
    %267 = vmatpush1.bf16.msra.mxu0 %v257
    %268 = vmatprep.subr.bf16.mxu0 0
    %269 = vmatpush1.bf16.msra.mxu0 %v256
    %270 = vmatprep.subr.bf16.mxu0 0
    %271 = vmatpush1.bf16.msra.mxu0 %v255
    %272 = vmatprep.subr.bf16.mxu0 0
    %273 = vmatpush1.bf16.msra.mxu0 %v254
    %274 = vmatprep.subr.bf16.mxu0 0
    %275 = vmatpush1.bf16.msra.mxu0 %v253
    %276 = vmatprep.subr.bf16.mxu0 0
    %277 = vmatpush1.bf16.msra.mxu0 %v252
    %278 = vmatprep.subr.bf16.mxu0 0
    %279 = vmatpush1.bf16.msra.mxu0 %v251
    %280 = vmatprep.subr.bf16.mxu0 0
    %281 = vmatpush1.bf16.msra.mxu0 %v250
    %282 = vmatprep.subr.bf16.mxu0 0
    %283 = vmatpush2.bf16.msra.mxu0 0
    %284 = vmatprep.subr.bf16.mxu0 0
    %285 = vmatpush2.bf16.msra.mxu0 0
    %286 = vmatprep.subr.bf16.mxu0 0
    %287 = vmatpush2.bf16.msra.mxu0 0
    %288 = vmatprep.subr.bf16.mxu0 0
    %289 = vmatpush2.bf16.msra.mxu0 0
    %290 = vmatprep.subr.bf16.mxu0 0
    %291 = vmatpush2.bf16.msra.mxu0 0
    %292 = vmatprep.subr.bf16.mxu0 0
    %293 = vmatpush2.bf16.msra.mxu0 0
    %294 = vmatprep.subr.bf16.mxu0 0
    %295 = vmatpush2.bf16.msra.mxu0 0
    %296 = vmatprep.subr.bf16.mxu0 0
    %297 = vmatpush2.bf16.msra.mxu0 0
    %298 = vmatprep.mubr.bf16.mxu0 0
    %299 = vmatmul.mubr.bf16.gmra.mxu0 %v201
    %v300 = vpop.f32.mrf.mxu0
    %v301 = vadd.f32 0.0, %v300
    %v302 = vpop.f32.mrf.mxu0
    %v303 = vpop.f32.mrf.mxu0
    %v304 = vpop.f32.mrf.mxu0
    %305 = vdwg.mxu0
    %v306 = vlaneseq
    %v307 = vand.u32 %v306, 127
    %vm308 = vcmp.eq.s32.totalorder %v307, 4
    %v309 = vsel %vm308, -1e+30, %v301
    %310 = vmax.xlane.f32.xlu0 %v309
    %v311 = vpop.xlane.xlu0 %310
    %v312 = vsub.f32 %v309, %v311
    %v313 = vmul.f32 %v312, 1.442695
    %v314 = vpow.pop %v313
    %315 = vadd.xlane.f32.xlu0 %v314
    %v316 = vpop.xlane.xlu0 %315
    %v317 = vrcp.pop %v316
    %v318 = vmul.f32 %v314, %v317
    %v319 = vsel %vm308, %v301, %v318
    %320 = vst [vmem:[#allocation12] sm:$0xff] %v319
    // Predicated region
    $region30: #{ac_forward.2} parent=1 // pred_check
      _
    $region31: #{ac_forward.2} parent=1 // pred_check_branch
      %322 = sbr.rel (0) target = $region33
    $region32: #{ac_forward.2} parent=1 // pred_region
      %s324 = ssub.s32 128, 128
      %325 = vsyncadd [#allocation9], %s324
      %s327 = sshll.u32 [#allocation12], 4
      %s328 = int_to_ptr.vmem [resolvable:$true] %s327
      %330 = dma.vmem_to_hbm [thread:$0]  %s328, 128, %s6, [#allocation9]
    $region33: #{ac_forward.2} parent=1 // pred_fallthru
      _
    // Predicated region
    $region34: #{ac_forward.2} parent=1 // pred_check
      _
    $region35: #{ac_forward.2} parent=1 // pred_check_branch
      %332 = sbr.rel (0) target = $region37
    $region36: #{ac_forward.2} parent=1 // pred_region
      %333 = dma.done [#allocation9], 128
    $region37: #{ac_forward.2} parent=1 // pred_fallthru
      _
    %334 = vsyncpa [#allocation8], 1
    %335 = vsyncpa [#allocation11], 1
    %336 = vsyncpa [#allocation9], 1

</llo_original>
